<compile_context>
chip_gen: v6e
topology: v6e:2x2x1
jax: 0.10.0
libtpu: 0.0.40
codegen_flags: <defaults>
</compile_context>

<pallas_src>
import jax
import jax.numpy as jnp
from jax.experimental import pallas as pl
from jax.experimental.pallas import tpu as pltpu


def _patch_encoder_kernel(x_ref, w_ref, pos_ref, o_ref):
    # x_ref  : (tile_rows, pack*P)   -- packed patch rows for G (b,t) groups
    # w_ref  : (pack*P, pack*D)      -- block-diagonal projection weight (resident)
    # pos_ref: (tile_rows, pack*D)   -- pos-emb + bias, packed & tiled (resident)
    # o_ref  : (tile_rows, pack*D)
    y = jnp.dot(x_ref[...], w_ref[...], preferred_element_type=jnp.float32)
    o_ref[...] = (y + pos_ref[...]).astype(o_ref.dtype)


def _choose_group(bt, rows_per_group, target_rows=1024):
    """Pick G = number of (b,t) groups per grid step.

    Constraints:
      * G divides bt (so every block covers whole groups).
      * G * rows_per_group is a multiple of 8 (sublane constraint) unless the
        block covers the whole row axis.
      * tile stays <= target_rows (keeps double-buffered VMEM small; safe on
        v7x's 64 MiB VMEM as well as v5e/v6e).
      * prefer a grid of length >= 2 so both v7x TensorCores are used.
    """
    total_rows = bt * rows_per_group
    candidates = []
    for g in range(1, bt + 1):
        if bt % g:
            continue
        tile_rows = g * rows_per_group
        if tile_rows != total_rows and tile_rows % 8 != 0:
            continue
        if tile_rows > target_rows and tile_rows != total_rows:
            continue
        candidates.append(g)
    if not candidates:
        return bt  # single full-array block is always legal
    multi = [g for g in candidates if bt // g >= 2]
    pool = multi if multi else candidates
    return max(pool)


def patch_encoder_t(patch, weight, bias, pos_emb, *, target_rows=1024):
    """
    patch  : (B, T, N, P) float32
    weight : (D, P)   -- nn.Linear weight layout
    bias   : (D,)
    pos_emb: (N, D)   -- nn.Embedding table
    returns: (B, T, N, D)
    """
    B, T, N, P = patch.shape
    D = weight.shape[0]
    BT = B * T

    # Fold the linear bias into the position table (done once, tiny).
    pos_pb = pos_emb + bias[None, :]                      # (N, D)

    # Pack `pack` consecutive patch rows per logical row (lane-dense I/O).
    pack = 1
    for cand in (4, 2):
        if N % cand == 0:
            pack = cand
            break

    rows_per_group = N // pack                            # packed rows per (b,t)
    total_rows = BT * rows_per_group

    # Packed input: free, contiguous reshape of the row-major layout.
    x2 = patch.reshape(total_rows, pack * P)

    # Block-diagonal weight so one (rows, pack*P) x (pack*P, pack*D) matmul
    # applies the same (P, D) projection to each packed row independently.
    w_t = weight.T                                        # (P, D)
    if pack == 1:
        w_bd = w_t
    else:
        w_bd = jnp.zeros((pack * P, pack * D), w_t.dtype)
        for i in range(pack):
            w_bd = w_bd.at[i * P:(i + 1) * P, i * D:(i + 1) * D].set(w_t)

    # Position(+bias) table in the packed layout, tiled to one tile's rows so
    # the kernel adds it directly (resident across the whole grid).
    pos_packed = pos_pb.reshape(rows_per_group, pack * D)

    G = _choose_group(BT, rows_per_group, target_rows)
    tile_rows = G * rows_per_group
    grid = (BT // G,)

    pos_tile = jnp.tile(pos_packed, (G, 1))               # (tile_rows, pack*D)

    out2 = pl.pallas_call(
        _patch_encoder_kernel,
        out_shape=jax.ShapeDtypeStruct((total_rows, pack * D), patch.dtype),
        grid=grid,
        in_specs=[
            pl.BlockSpec((tile_rows, pack * P), lambda i: (i, 0)),  # streamed rows
            pl.BlockSpec((pack * P, pack * D), lambda i: (0, 0)),   # resident weight
            pl.BlockSpec((tile_rows, pack * D), lambda i: (0, 0)),  # resident pos+bias
        ],
        out_specs=pl.BlockSpec((tile_rows, pack * D), lambda i: (i, 0)),
        compiler_params=pltpu.CompilerParams(
            dimension_semantics=("parallel",),
        ),
    )(x2, w_bd, pos_tile)

    return out2.reshape(B, T, N, D)


if __name__ == "__main__":
    # Small shapes consistent with the module's forward:
    #   num_patchesT = 8, patch_sizeT = 32, projection_dimT = 64
    #   patch has shape (batch, time, num_patchesT, patch_sizeT)
    B, T = 2, 4
    num_patchesT, patch_sizeT, projection_dimT = 8, 32, 64

    key = jax.random.PRNGKey(0)
    k_x, k_w, k_b, k_e = jax.random.split(key, 4)

    patch = jax.random.normal(k_x, (B, T, num_patchesT, patch_sizeT), jnp.float32)

    # Deterministic synthetic parameters (shapes match nn.Linear / nn.Embedding).
    bound = 1.0 / (patch_sizeT ** 0.5)
    weight = jax.random.uniform(
        k_w, (projection_dimT, patch_sizeT), jnp.float32, -bound, bound)
    bias = jax.random.uniform(
        k_b, (projection_dimT,), jnp.float32, -bound, bound)
    pos_emb = jax.random.normal(
        k_e, (num_patchesT, projection_dimT), jnp.float32)

    out = patch_encoder_t(patch, weight, bias, pos_emb)
    out = jax.block_until_ready(out)

    # Pure-JAX reference for correctness.
    ref = (jnp.einsum("btnp,dp->btnd", patch, weight)
           + bias[None, None, None, :]
           + pos_emb[None, None, :, :])
    assert out.shape == (B, T, num_patchesT, projection_dimT)
    assert jnp.allclose(out, ref, atol=1e-5, rtol=1e-5)

    print("KERNEL_OK")
</pallas_src>

<mosaic_0001>
module attributes {stable_mosaic.version = 11 : i64} {
  func.func @_patch_encoder_kernel(%arg0: i32, %arg1: memref<8x128xf32, #tpu.memory_space<vmem>>, %arg2: memref<128x256xf32, #tpu.memory_space<vmem>>, %arg3: memref<8x256xf32, #tpu.memory_space<vmem>>, %arg4: memref<8x256xf32, #tpu.memory_space<vmem>>) attributes {dimension_semantics = [#tpu.dimension_semantics<parallel>], iteration_bounds = array<i64: 2>, scalar_prefetch = 0 : i64, scratch_operands = 0 : i64, tpu.core_type = #tpu.core_type<tc>, window_params = [{transform_indices = @transform_0, window_bounds = array<i64: 8, 128>}, {pipeline_mode = #tpu.pipeline_mode<synchronous>, transform_indices = @transform_1, window_bounds = array<i64: 128, 256>}, {pipeline_mode = #tpu.pipeline_mode<synchronous>, transform_indices = @transform_2, window_bounds = array<i64: 8, 256>}, {transform_indices = @transform_3, window_bounds = array<i64: 8, 256>}]} {
    %c0 = arith.constant 0 : index
    %c0_0 = arith.constant 0 : index
    %0 = vector.load %arg1[%c0, %c0_0] : memref<8x128xf32, #tpu.memory_space<vmem>>, vector<8x128xf32>
    %c0_1 = arith.constant 0 : index
    %c0_2 = arith.constant 0 : index
    %1 = vector.load %arg2[%c0_1, %c0_2] : memref<128x256xf32, #tpu.memory_space<vmem>>, vector<128x256xf32>
    %cst = arith.constant dense<0.000000e+00> : vector<8x256xf32>
    %2 = tpu.matmul %0, %1, %cst {dimension_numbers = #tpu.dot_dimension_numbers<[1], [0], [0], [1], [0, 0, 1, 1], [], []>} : vector<8x128xf32>, vector<128x256xf32>, vector<8x256xf32> -> vector<8x256xf32>
    %c0_3 = arith.constant 0 : index
    %c0_4 = arith.constant 0 : index
    %3 = vector.load %arg3[%c0_3, %c0_4] : memref<8x256xf32, #tpu.memory_space<vmem>>, vector<8x256xf32>
    %4 = arith.addf %2, %3 : vector<8x256xf32>
    %c0_5 = arith.constant 0 : index
    %c0_6 = arith.constant 0 : index
    %5 = vector.load %arg4[%c0_5, %c0_6] : memref<8x256xf32, #tpu.memory_space<vmem>>, vector<8x256xf32>
    tpu.vector_store %arg4[%c0_5, %c0_6], %4 {strides = array<i32>} : memref<8x256xf32, #tpu.memory_space<vmem>>, vector<8x256xf32>,
    return
  }
  func.func @transform_0(%arg0: i32) -> (i32, i32) {
    %c0_i32 = arith.constant 0 : i32
    %c0_i32_0 = arith.constant 0 : i32
    return %arg0, %c0_i32 : i32, i32
  }
  func.func @transform_1(%arg0: i32) -> (i32, i32) {
    %c0_i32 = arith.constant 0 : i32
    %c0_i32_0 = arith.constant 0 : i32
    %c0_i32_1 = arith.constant 0 : i32
    return %c0_i32, %c0_i32_0 : i32, i32
  }
  func.func @transform_2(%arg0: i32) -> (i32, i32) {
    %c0_i32 = arith.constant 0 : i32
    %c0_i32_0 = arith.constant 0 : i32
    %c0_i32_1 = arith.constant 0 : i32
    return %c0_i32, %c0_i32_0 : i32, i32
  }
  func.func @transform_3(%arg0: i32) -> (i32, i32) {
    %c0_i32 = arith.constant 0 : i32
    %c0_i32_0 = arith.constant 0 : i32
    return %arg0, %c0_i32 : i32, i32
  }
}

</mosaic_0001>

<llo_original>
// kernel: tpu_custom_call.1
$region0: #{tpu_custom_call.1}
  #allocation0 [shape = 'u32[]', space=smem, size = 0x4, offset = 0x4, fixed_abs, tag = 'smem constant byte address 0x4 - core index']
  #allocation1 [shape = 'u32[144,128]{1,0:T(1,128)}', space=vmem, size = 0x12000, scoped, tag = 'internal scratch']
  %s0 = inlined_call_operand.hbm [shape: f32[16,128], index: 0, kind: input, shape index: {}]
  %s1 = inlined_call_operand.hbm [shape: f32[128,256], index: 1, kind: input, shape index: {}]
  %s2 = inlined_call_operand.hbm [shape: f32[8,256], index: 2, kind: input, shape index: {}]
  %s3 = inlined_call_operand.hbm [shape: f32[16,256], index: 3, kind: output, shape index: {}]
  %s4 = sld [smem:[#allocation0]]
  $region57: #{tpu_custom_call.1} parent=0
    _
  %s6 = ssub.s32 1, %s4
  %s7 = scalar_select 0, %s6, %s4
  $region1: #{tpu_custom_call.1} parent=0
    #allocation2 [shape = 'u8[8192]{0}', space=vmem, size = 0x2000, scoped, tag = 'input window, operand 0']
    #allocation3 [shape = 's32[2]{0}', space=sflag, size = 0x8, scoped, tag = 'scoped memory for tpu_custom_call.1']
    #allocation4 [shape = 's32[2]{0}', space=sflag, size = 0x8, scoped, tag = 'scoped memory for tpu_custom_call.1']
    #allocation5 [shape = 'u8[131072]{0}', space=vmem, size = 0x20000, scoped, tag = 'input window, operand 1, single buffered']
    #allocation6 [shape = 's32[1]{0}', space=sflag, size = 0x4, scoped, tag = 'scoped memory for tpu_custom_call.1']
    #allocation7 [shape = 'u8[8192]{0}', space=vmem, size = 0x2000, scoped, tag = 'input window, operand 2, single buffered']
    #allocation8 [shape = 'u8[16384]{0}', space=vmem, size = 0x4000, scoped, tag = 'output window, operand 0']
    %8 = vsyncpa [#allocation3], 0
    %s9 = scalar_lea.sflag [#allocation3], 1
    %10 = vsyncpa %s9, 0
    %11 = vsyncpa [#allocation6], 0
    %12 = vsyncpa [#allocation4], 0
    %s13 = scalar_lea.sflag [#allocation4], 1
    %14 = vsyncpa %s13, 0
    loop: start=0, step=1, limit=4
    $region2: #{tpu_custom_call.1} parent=1 // loop_pre_header
      _
    $region3: #{tpu_custom_call.1} parent=1 // loop_header
      %s16 = sphi 0, %s20
      %p17 = scmp.ge.s32.totalorder %s16, 4
      %s26 = sphi 0, %s28
      %s29 = sphi 0, %s26
      %s30 = sphi 0, %s29
      %s46 = sphi 0, %s30
      %s50 = sphi 0, %s50
      %s52 = sphi 0, %s50
      %s53 = sphi 0, %s52
      %s67 = sphi 0, %s53
      %s71 = sphi 0, %s71
      %s73 = sphi 0, %s71
      %s74 = sphi 0, %s73
      %s88 = sphi 0, %s74
      %s94 = sphi 0, %s96
      %s97 = sphi 0, %s94
      %s98 = sphi 0, %s97
      %s114 = sphi 0, %s98
    $region4: #{tpu_custom_call.1} parent=1 // loop_header_branch
      %19 = sbr.rel (%p17) target = $region8
    $region5: #{tpu_custom_call.1} parent=1 // loop_body
      %s21 = ssub.s32 %s16, 1
      %s22 = ssub.s32 %s16, 2
      %s23 = sadd.s32 %s16, 1
      %s24 = ssub.s32 %s16, %s23
      %p25 = scmp.eq.s32.totalorder %s24, 0
      %s27 = sadd.s32 %s26, 1
      %s28 = scalar_select %p25, %s26, %s27
      %p31 = pneg %p25
      %p32 = scmp.eq.s32.totalorder %s16, 1
      %p33 = por %p31, %p32
      %p34 = scmp.ne.s32.totalorder %s26, %s29
      %p35 = scmp.eq.s32.totalorder %s16, 0
      %p36 = por %p34, %p35
      %p37 = scmp.ne.s32.totalorder %s26, %s29
      %p38 = scmp.eq.s32.totalorder %s21, 1
      %p39 = por %p37, %p38
      %p40 = scmp.ne.s32.totalorder %s29, %s30
      %p41 = scmp.eq.s32.totalorder %s21, 0
      %p42 = por %p40, %p41
      %p43 = scmp.ne.s32.totalorder %s29, %s30
      %p44 = scmp.eq.s32.totalorder %s22, 1
      %p45 = por %p43, %p44
      %p47 = scmp.ne.s32.totalorder %s30, %s46
      %p48 = scmp.eq.s32.totalorder %s22, 0
      %p49 = por %p47, %p48
      %s51 = sadd.s32 %s50, 1
      %p54 = scmp.eq.s32.totalorder %s16, 1
      %p55 = scmp.ne.s32.totalorder %s50, %s52
      %p56 = scmp.eq.s32.totalorder %s16, 0
      %p57 = por %p55, %p56
      %p58 = scmp.ne.s32.totalorder %s50, %s52
      %p59 = scmp.eq.s32.totalorder %s21, 1
      %p60 = por %p58, %p59
      %p61 = scmp.ne.s32.totalorder %s52, %s53
      %p62 = scmp.eq.s32.totalorder %s21, 0
      %p63 = por %p61, %p62
      %p64 = scmp.ne.s32.totalorder %s52, %s53
      %p65 = scmp.eq.s32.totalorder %s22, 1
      %p66 = por %p64, %p65
      %p68 = scmp.ne.s32.totalorder %s53, %s67
      %p69 = scmp.eq.s32.totalorder %s22, 0
      %p70 = por %p68, %p69
      %s72 = sadd.s32 %s71, 1
      %p75 = scmp.eq.s32.totalorder %s16, 1
      %p76 = scmp.ne.s32.totalorder %s71, %s73
      %p77 = scmp.eq.s32.totalorder %s16, 0
      %p78 = por %p76, %p77
      %p79 = scmp.ne.s32.totalorder %s71, %s73
      %p80 = scmp.eq.s32.totalorder %s21, 1
      %p81 = por %p79, %p80
      %p82 = scmp.ne.s32.totalorder %s73, %s74
      %p83 = scmp.eq.s32.totalorder %s21, 0
      %p84 = por %p82, %p83
      %p85 = scmp.ne.s32.totalorder %s73, %s74
      %p86 = scmp.eq.s32.totalorder %s22, 1
      %p87 = por %p85, %p86
      %p89 = scmp.ne.s32.totalorder %s74, %s88
      %p90 = scmp.eq.s32.totalorder %s22, 0
      %p91 = por %p89, %p90
      %s92 = ssub.s32 %s16, %s23
      %p93 = scmp.eq.s32.totalorder %s92, 0
      %s95 = sadd.s32 %s94, 1
      %s96 = scalar_select %p93, %s94, %s95
      %p99 = pneg %p93
      %p100 = scmp.eq.s32.totalorder %s16, 1
      %p101 = por %p99, %p100
      %p102 = scmp.ne.s32.totalorder %s94, %s97
      %p103 = scmp.eq.s32.totalorder %s16, 0
      %p104 = por %p102, %p103
      %p105 = scmp.ne.s32.totalorder %s94, %s97
      %p106 = scmp.eq.s32.totalorder %s21, 1
      %p107 = por %p105, %p106
      %p108 = scmp.ne.s32.totalorder %s97, %s98
      %p109 = scmp.eq.s32.totalorder %s21, 0
      %p110 = por %p108, %p109
      %p111 = scmp.ne.s32.totalorder %s97, %s98
      %p112 = scmp.eq.s32.totalorder %s22, 1
      %p113 = por %p111, %p112
      %p115 = scmp.ne.s32.totalorder %s98, %s114
      %p116 = scmp.eq.s32.totalorder %s22, 0
      %p117 = por %p115, %p116
      %p118 = scmp.le.s32.totalorder 1, %s16
      %p119 = scmp.lt.s32.totalorder %s16, 3
      %p120 = pnand %p118, %p119
      %p121 = pneg %p120
      // Predicated region
      $region9: #{tpu_custom_call.1} parent=5 // pred_check
        _
      $region10: #{tpu_custom_call.1} parent=5 // pred_check_branch
        %123 = sbr.rel (%p120) target = $region12
      $region11: #{tpu_custom_call.1} parent=5 // pred_region
        %s124 = ssub.s32 %s16, 1
        // Predicated region
        $region13: #{tpu_custom_call.1} parent=11 // pred_check
          %p125 = pneg %p63
        $region14: #{tpu_custom_call.1} parent=11 // pred_check_branch
          %127 = sbr.rel (%p125) target = $region16
        $region15: #{tpu_custom_call.1} parent=11 // pred_region
          %s129 = ssub.s32 4096, 4096
          %130 = vsyncadd [#allocation6], %s129
          %s131 = sshll.u32 [#allocation5], 4
          %s132 = int_to_ptr.vmem [resolvable:$true] %s131
          %137 = dma.hbm_to_vmem [thread:$0]  %s1, 4096, %s132, [#allocation6], 256, 256, 16
        $region16: #{tpu_custom_call.1} parent=11 // pred_fallthru
          _
        // Predicated region
        $region17: #{tpu_custom_call.1} parent=11 // pred_check
          %p138 = pneg %p84
        $region18: #{tpu_custom_call.1} parent=11 // pred_check_branch
          %140 = sbr.rel (%p138) target = $region20
        $region19: #{tpu_custom_call.1} parent=11 // pred_region
          %s142 = ssub.s32 256, 256
          %143 = vsyncadd [#allocation6], %s142
          %s145 = sshll.u32 [#allocation7], 4
          %s146 = int_to_ptr.vmem [resolvable:$true] %s145
          %148 = dma.hbm_to_vmem [thread:$0]  %s2, 256, %s146, [#allocation6]
        $region20: #{tpu_custom_call.1} parent=11 // pred_fallthru
          _
      $region12: #{tpu_custom_call.1} parent=5 // pred_fallthru
        _
      %p149 = scmp.lt.s32.totalorder %s16, 2
      // Predicated region
      $region21: #{tpu_custom_call.1} parent=5 // pred_check
        %p150 = pneg %p149
      $region22: #{tpu_custom_call.1} parent=5 // pred_check_branch
        %152 = sbr.rel (%p150) target = $region24
      $region23: #{tpu_custom_call.1} parent=5 // pred_region
        // Predicated region
        $region25: #{tpu_custom_call.1} parent=23 // pred_check
          %p153 = pneg %p36
        $region26: #{tpu_custom_call.1} parent=23 // pred_check_branch
          %155 = sbr.rel (%p153) target = $region28
        $region27: #{tpu_custom_call.1} parent=23 // pred_region
          %s156 = sand.u32 %s26, 1
          %s157 = scalar_lea.sflag [#allocation3], %s156
          %s158 = sand.u32 %s26, 1
          %s159 = smul.addr %s158, 8
          %s160 = scalar_lea.vmem [#allocation2], %s159
          %s162 = ssub.s32 128, 128
          %163 = vsyncadd %s157, %s162
          %s164 = smul.addr %s16, 128
          %s165 = scalar_lea.hbm %s0, %s164
          %s167 = sshll.u32 %s160, 4
          %s168 = int_to_ptr.vmem [resolvable:$true] %s167
          %170 = dma.hbm_to_vmem [thread:$0]  %s165, 128, %s168, %s157
        $region28: #{tpu_custom_call.1} parent=23 // pred_fallthru
          _
      $region24: #{tpu_custom_call.1} parent=5 // pred_fallthru
        _
      %p171 = scmp.le.s32.totalorder 1, %s16
      %p172 = scmp.lt.s32.totalorder %s16, 3
      %p173 = pnand %p171, %p172
      %p174 = pneg %p173
      // Predicated region
      $region29: #{tpu_custom_call.1} parent=5 // pred_check
        _
      $region30: #{tpu_custom_call.1} parent=5 // pred_check_branch
        %176 = sbr.rel (%p173) target = $region32
      $region31: #{tpu_custom_call.1} parent=5 // pred_region
        %s177 = ssub.s32 %s16, 1
        %s178 = sand.u32 %s29, 1
        %s179 = scalar_lea.sflag [#allocation3], %s178
        %s180 = sand.u32 %s29, 1
        %s181 = smul.addr %s180, 8
        %s182 = scalar_lea.vmem [#allocation2], %s181
        // Predicated region
        $region33: #{tpu_custom_call.1} parent=31 // pred_check
          %p183 = pneg %p42
        $region34: #{tpu_custom_call.1} parent=31 // pred_check_branch
          %185 = sbr.rel (%p183) target = $region36
        $region35: #{tpu_custom_call.1} parent=31 // pred_region
          %186 = dma.done %s179, 128
        $region36: #{tpu_custom_call.1} parent=31 // pred_fallthru
          _
        // Predicated region
        $region37: #{tpu_custom_call.1} parent=31 // pred_check
          %p187 = pneg %p63
        $region38: #{tpu_custom_call.1} parent=31 // pred_check_branch
          %189 = sbr.rel (%p187) target = $region40
        $region39: #{tpu_custom_call.1} parent=31 // pred_region
          %190 = dma.done [#allocation6], 4096
        $region40: #{tpu_custom_call.1} parent=31 // pred_fallthru
          _
        // Predicated region
        $region41: #{tpu_custom_call.1} parent=31 // pred_check
          %p191 = pneg %p84
        $region42: #{tpu_custom_call.1} parent=31 // pred_check_branch
          %193 = sbr.rel (%p191) target = $region44
        $region43: #{tpu_custom_call.1} parent=31 // pred_region
          %194 = dma.done [#allocation6], 256
        $region44: #{tpu_custom_call.1} parent=31 // pred_fallthru
          _
        %s195 = sand.u32 %s29, 1
        %s196 = scalar_lea.sflag [#allocation3], %s195
        %s197 = sand.u32 %s29, 1
        %s198 = smul.addr %s197, 8
        %s199 = scalar_lea.vmem [#allocation2], %s198
        %p200 = pneg %p42
        %p201 = pneg %p39
        %p202 = pneg %p63
        %p203 = pneg %p60
        %p204 = pneg %p84
        %p205 = pneg %p81
        %p206 = pneg %p110
        %p207 = pneg %p107
        %s208 = sand.u32 %s97, 1
        %s209 = scalar_lea.sflag [#allocation4], %s208
        %s210 = sand.u32 %s97, 1
        %s211 = smul.addr %s210, 16
        %s212 = scalar_lea.vmem [#allocation8], %s211
        %v213 = vld [vmem:[%s182] sm:$0xff]
        %v214 = vld [vmem:[#allocation5] sm:$0xff]
        %v215 = vld [vmem:[#allocation5 + $0x8] sm:$0xff]
        %v216 = vld [vmem:[#allocation5 + $0x10] sm:$0xff]
        %v217 = vld [vmem:[#allocation5 + $0x18] sm:$0xff]
        %v218 = vld [vmem:[#allocation5 + $0x20] sm:$0xff]
        %v219 = vld [vmem:[#allocation5 + $0x28] sm:$0xff]
        %v220 = vld [vmem:[#allocation5 + $0x30] sm:$0xff]
        %v221 = vld [vmem:[#allocation5 + $0x38] sm:$0xff]
        %v222 = vld [vmem:[#allocation5 + $0x40] sm:$0xff]
        %v223 = vld [vmem:[#allocation5 + $0x48] sm:$0xff]
        %v224 = vld [vmem:[#allocation5 + $0x50] sm:$0xff]
        %v225 = vld [vmem:[#allocation5 + $0x58] sm:$0xff]
        %v226 = vld [vmem:[#allocation5 + $0x60] sm:$0xff]
        %v227 = vld [vmem:[#allocation5 + $0x68] sm:$0xff]
        %v228 = vld [vmem:[#allocation5 + $0x70] sm:$0xff]
        %v229 = vld [vmem:[#allocation5 + $0x78] sm:$0xff]
        %v230 = vld [vmem:[#allocation5 + $0x80] sm:$0xff]
        %v231 = vld [vmem:[#allocation5 + $0x88] sm:$0xff]
        %v232 = vld [vmem:[#allocation5 + $0x90] sm:$0xff]
        %v233 = vld [vmem:[#allocation5 + $0x98] sm:$0xff]
        %v234 = vld [vmem:[#allocation5 + $0xa0] sm:$0xff]
        %v235 = vld [vmem:[#allocation5 + $0xa8] sm:$0xff]
        %v236 = vld [vmem:[#allocation5 + $0xb0] sm:$0xff]
        %v237 = vld [vmem:[#allocation5 + $0xb8] sm:$0xff]
        %v238 = vld [vmem:[#allocation5 + $0xc0] sm:$0xff]
        %v239 = vld [vmem:[#allocation5 + $0xc8] sm:$0xff]
        %v240 = vld [vmem:[#allocation5 + $0xd0] sm:$0xff]
        %v241 = vld [vmem:[#allocation5 + $0xd8] sm:$0xff]
        %v242 = vld [vmem:[#allocation5 + $0xe0] sm:$0xff]
        %v243 = vld [vmem:[#allocation5 + $0xe8] sm:$0xff]
        %v244 = vld [vmem:[#allocation5 + $0xf0] sm:$0xff]
        %v245 = vld [vmem:[#allocation5 + $0xf8] sm:$0xff]
        %v246 = vld [vmem:[#allocation7] sm:$0xff]
        %v247 = vld [vmem:[#allocation7 + $0x8] sm:$0xff]
        %248 = vmatprep.subr.mxu0 %v245
        %249 = vmatpush1.msra.mxu0 %v244
        %250 = vmatprep.subr.mxu0 %v243
        %251 = vmatpush1.msra.mxu0 %v242
        %252 = vmatprep.subr.mxu0 %v241
        %253 = vmatpush1.msra.mxu0 %v240
        %254 = vmatprep.subr.mxu0 %v239
        %255 = vmatpush1.msra.mxu0 %v238
        %256 = vmatprep.subr.mxu0 %v237
        %257 = vmatpush1.msra.mxu0 %v236
        %258 = vmatprep.subr.mxu0 %v235
        %259 = vmatpush1.msra.mxu0 %v234
        %260 = vmatprep.subr.mxu0 %v233
        %261 = vmatpush1.msra.mxu0 %v232
        %262 = vmatprep.subr.mxu0 %v231
        %263 = vmatpush1.msra.mxu0 %v230
        %264 = vmatprep.subr.mxu0 %v229
        %265 = vmatpush1.msra.mxu0 %v228
        %266 = vmatprep.subr.mxu0 %v227
        %267 = vmatpush1.msra.mxu0 %v226
        %268 = vmatprep.subr.mxu0 %v225
        %269 = vmatpush1.msra.mxu0 %v224
        %270 = vmatprep.subr.mxu0 %v223
        %271 = vmatpush1.msra.mxu0 %v222
        %272 = vmatprep.subr.mxu0 %v221
        %273 = vmatpush1.msra.mxu0 %v220
        %274 = vmatprep.subr.mxu0 %v219
        %275 = vmatpush1.msra.mxu0 %v218
        %276 = vmatprep.subr.mxu0 %v217
        %277 = vmatpush1.msra.mxu0 %v216
        %278 = vmatprep.subr.mxu0 %v215
        %279 = vmatpush1.msra.mxu0 %v214
        %280 = vmatprep.subr.mxu0 0.0
        %281 = vmatpush2.msra.mxu0 0.0
        %282 = vmatprep.subr.mxu0 0.0
        %283 = vmatpush2.msra.mxu0 0.0
        %284 = vmatprep.subr.mxu0 0.0
        %285 = vmatpush2.msra.mxu0 0.0
        %286 = vmatprep.subr.mxu0 0.0
        %287 = vmatpush2.msra.mxu0 0.0
        %288 = vmatprep.subr.mxu0 0.0
        %289 = vmatpush2.msra.mxu0 0.0
        %290 = vmatprep.subr.mxu0 0.0
        %291 = vmatpush2.msra.mxu0 0.0
        %292 = vmatprep.subr.mxu0 0.0
        %293 = vmatpush2.msra.mxu0 0.0
        %294 = vmatprep.subr.mxu0 0.0
        %295 = vmatpush2.msra.mxu0 0.0
        %296 = vmatprep.subr.mxu0 0.0
        %297 = vmatpush2.msra.mxu0 0.0
        %298 = vmatprep.subr.mxu0 0.0
        %299 = vmatpush2.msra.mxu0 0.0
        %300 = vmatprep.subr.mxu0 0.0
        %301 = vmatpush2.msra.mxu0 0.0
        %302 = vmatprep.subr.mxu0 0.0
        %303 = vmatpush2.msra.mxu0 0.0
        %304 = vmatprep.subr.mxu0 0.0
        %305 = vmatpush2.msra.mxu0 0.0
        %306 = vmatprep.subr.mxu0 0.0
        %307 = vmatpush2.msra.mxu0 0.0
        %308 = vmatprep.subr.mxu0 0.0
        %309 = vmatpush2.msra.mxu0 0.0
        %310 = vmatprep.subr.mxu0 0.0
        %311 = vmatpush2.msra.mxu0 0.0
        %312 = vmatprep.mubr.f32.mxu0 0.0
        %313 = vmatmul.mubr.f32.gmra.mxu0 %v213
        %v314 = vpop.f32.mrf.mxu0
        %v315 = vadd.f32 %v246, %v314
        %v316 = vpop.f32.mrf.mxu0
        %v317 = vadd.f32 %v247, %v316
        %318 = vdwg.mxu0
        %319 = vst [vmem:[%s212] sm:$0xff] %v315
        %320 = vst [vmem:[%s212 + $0x8] sm:$0xff] %v317
        %s321 = sand.u32 %s97, 1
        %s322 = scalar_lea.sflag [#allocation4], %s321
        %s323 = sand.u32 %s97, 1
        %s324 = smul.addr %s323, 16
        %s325 = scalar_lea.vmem [#allocation8], %s324
        // Predicated region
        $region45: #{tpu_custom_call.1} parent=31 // pred_check
          %p326 = pneg %p107
        $region46: #{tpu_custom_call.1} parent=31 // pred_check_branch
          %328 = sbr.rel (%p326) target = $region48
        $region47: #{tpu_custom_call.1} parent=31 // pred_region
          %s330 = ssub.s32 256, 256
          %331 = vsyncadd %s322, %s330
          %s332 = smul.addr %s21, 2
          %s333 = smul.addr %s332, 128
          %s334 = scalar_lea.hbm %s3, %s333
          %s336 = sshll.u32 %s325, 4
          %s337 = int_to_ptr.vmem [resolvable:$true] %s336
          %339 = dma.vmem_to_hbm [thread:$0]  %s337, 256, %s334, %s322
        $region48: #{tpu_custom_call.1} parent=31 // pred_fallthru
          _
      $region32: #{tpu_custom_call.1} parent=5 // pred_fallthru
        _
      %p340 = scmp.le.s32.totalorder 2, %s16
      // Predicated region
      $region49: #{tpu_custom_call.1} parent=5 // pred_check
        %p341 = pneg %p340
      $region50: #{tpu_custom_call.1} parent=5 // pred_check_branch
        %343 = sbr.rel (%p341) target = $region52
      $region51: #{tpu_custom_call.1} parent=5 // pred_region
        %s344 = ssub.s32 %s16, 2
        // Predicated region
        $region53: #{tpu_custom_call.1} parent=51 // pred_check
          %p345 = pneg %p113
        $region54: #{tpu_custom_call.1} parent=51 // pred_check_branch
          %347 = sbr.rel (%p345) target = $region56
        $region55: #{tpu_custom_call.1} parent=51 // pred_region
          %s348 = sand.u32 %s98, 1
          %s349 = scalar_lea.sflag [#allocation4], %s348
          %s350 = sand.u32 %s98, 1
          %s351 = smul.addr %s350, 16
          %s352 = scalar_lea.vmem [#allocation8], %s351
          %353 = dma.done %s349, 256
        $region56: #{tpu_custom_call.1} parent=51 // pred_fallthru
          _
      $region52: #{tpu_custom_call.1} parent=5 // pred_fallthru
        _
    $region6: #{tpu_custom_call.1} parent=1 // loop_footer
      %s20 = sadd.s32 1, %s16
    $region7: #{tpu_custom_call.1} parent=1 // loop_footer_branch
      %15 = sbr.rel target = $region3
    $region8: #{tpu_custom_call.1} parent=1 // loop_exit
      _
    %354 = vsyncpa [#allocation3], 1
    %s355 = scalar_lea.sflag [#allocation3], 1
    %356 = vsyncpa %s355, 1
    %357 = vsyncpa [#allocation6], 1
    %358 = vsyncpa [#allocation4], 1
    %s359 = scalar_lea.sflag [#allocation4], 1
    %360 = vsyncpa %s359, 1

</llo_original>
